<compile_context>
chip_gen: v7x
topology: tpu7x:2x2x1
jax: 0.10.0
libtpu: 0.0.40
codegen_flags: <defaults>
</compile_context>

<pallas_src>
import jax
import jax.numpy as jnp
from jax.experimental import pallas as pl
from jax.experimental.pallas import tpu as pltpu

HIDDEN = 128
LEAKY_SLOPE = 0.04


def _generator_kernel(x_ref, w1_ref, b1_ref, w2_ref, b2_ref, o_ref):
    # x : [TM, Z]  f32 (cast to bf16 in-regs)   w1: [Z, 128] bf16   b1: [1, 128] f32
    # w2: [128, D] bf16                         b2: [1, D]   f32    o : [TM, D]  bf16/f32
    x = x_ref[...].astype(jnp.bfloat16)                       # in-kernel cast; no extra HBM pass
    h = jnp.dot(x, w1_ref[...],
                preferred_element_type=jnp.float32) + b1_ref[...]
    h = jnp.maximum(h, LEAKY_SLOPE * h)                       # LeakyReLU(0.04), single VALU op
    z = jnp.dot(h.astype(jnp.bfloat16), w2_ref[...],
                preferred_element_type=jnp.float32) + b2_ref[...]
    o_ref[...] = jnp.tanh(z).astype(o_ref.dtype)              # Tanh in f32 (EUP), store bf16/f32


def _round_up(x, m):
    return ((x + m - 1) // m) * m


def generator_forward(x, w1, b1, w2, b2, *, block_m=1024, out_dtype=jnp.bfloat16):
    """x: [B, z_dim]; w1: [z_dim, 128]; b1: [1, 128]; w2: [128, img_dim]; b2: [1, img_dim].
    Returns [B, img_dim] in out_dtype (bf16 by default; pass jnp.float32 for f32 outputs)."""
    B, Z = x.shape
    H = w1.shape[1]
    D = w2.shape[1]

    # Params as MXU operands: bf16 weights (no-op if already stored bf16), f32 biases.
    w1b = w1 if w1.dtype == jnp.bfloat16 else w1.astype(jnp.bfloat16)
    w2b = w2 if w2.dtype == jnp.bfloat16 else w2.astype(jnp.bfloat16)
    b1f = jnp.asarray(b1, jnp.float32).reshape(1, H)
    b2f = jnp.asarray(b2, jnp.float32).reshape(1, D)

    x_bytes = jnp.dtype(x.dtype).itemsize
    out_bytes = jnp.dtype(out_dtype).itemsize

    # Real VMEM capacity (v5e/v6e: 128 MiB, v7x: 64 MiB/TC); conservative fallback.
    try:
        vmem_cap = int(pltpu.get_tpu_info().vmem_capacity_bytes)
    except Exception:
        vmem_cap = 64 << 20
    vmem_target = int(vmem_cap * 0.75)

    weights_bytes = Z * H * 2 + H * 4 + H * D * 2 + D * 4      # bf16 weights + f32 biases

    def working_set(tm):
        return (2 * tm * Z * x_bytes                           # double-buffered x tiles
                + 2 * tm * D * out_bytes                       # double-buffered out tiles
                + 2 * weights_bytes                            # resident weights (default 2-buf)
                + tm * Z * 2 + tm * H * 4 + tm * D * 4         # bf16 x, h, z intermediates
                + (2 << 20))                                   # compiler scratch headroom

    # Batch tile: aim for >= 2 grid steps (megacore sharding on v7x) and 16-row alignment
    # (bf16 sublane packing); shrink until the per-step working set fits real VMEM.
    align = 16 if B >= 16 else 8
    tm = max(align, min(block_m, _round_up(pl.cdiv(B, 2), align)))
    tm = min(tm, _round_up(B, align))
    while tm > align and working_set(tm) > vmem_target:
        tm = max(align, _round_up(tm // 2, align))

    num_tiles = pl.cdiv(B, tm)   # ragged tail handled by Pallas partial-block masking
    vmem_limit = int(min(int(vmem_cap * 0.9), max(working_set(tm) + (4 << 20), 16 << 20)))

    out = pl.pallas_call(
        _generator_kernel,
        out_shape=jax.ShapeDtypeStruct((B, D), out_dtype),
        grid_spec=pltpu.PrefetchScalarGridSpec(
            num_scalar_prefetch=0,
            grid=(num_tiles,),
            in_specs=[
                pl.BlockSpec((tm, Z), lambda i: (i, 0)),   # x tile (pipelined per grid step)
                pl.BlockSpec((Z, H), lambda i: (0, 0)),    # w1 resident (constant index_map)
                pl.BlockSpec((1, H), lambda i: (0, 0)),    # b1 resident
                pl.BlockSpec((H, D), lambda i: (0, 0)),    # w2 resident
                pl.BlockSpec((1, D), lambda i: (0, 0)),    # b2 resident
            ],
            out_specs=pl.BlockSpec((tm, D), lambda i: (i, 0)),  # lane-dense (D multiple of 128)
        ),
        compiler_params=pltpu.CompilerParams(
            dimension_semantics=("parallel",),
            vmem_limit_bytes=vmem_limit,
        ),
    )(x, w1b, b1f, w2b, b2f)

    return out


def init_params(key, z_dim, img_dim):
    """Deterministic nn.Linear-style init; weights stored as [in, out].
    Weights are cast to bf16 once at init (MXU operand dtype); biases stay f32."""
    k1, k2, k3, k4 = jax.random.split(key, 4)
    bound1 = 1.0 / jnp.sqrt(z_dim)
    bound2 = 1.0 / jnp.sqrt(HIDDEN)
    w1 = jax.random.uniform(k1, (z_dim, HIDDEN), jnp.float32, -bound1, bound1).astype(jnp.bfloat16)
    b1 = jax.random.uniform(k2, (1, HIDDEN), jnp.float32, -bound1, bound1)
    w2 = jax.random.uniform(k3, (HIDDEN, img_dim), jnp.float32, -bound2, bound2).astype(jnp.bfloat16)
    b2 = jax.random.uniform(k4, (1, img_dim), jnp.float32, -bound2, bound2)
    return w1, b1, w2, b2


if __name__ == "__main__":
    key = jax.random.PRNGKey(0)
    k_x, k_p = jax.random.split(key)

    batch = 64       # >= 2 grid steps: exercises the pipelined / parallel batch axis
    z_dim = 64
    img_dim = 256    # small synthetic flattened image size

    x = jax.random.normal(k_x, (batch, z_dim), jnp.float32)
    w1, b1, w2, b2 = init_params(k_p, z_dim, img_dim)

    out_bf16 = generator_forward(x, w1, b1, w2, b2)                        # default bf16 stores
    out_f32 = generator_forward(x, w1, b1, w2, b2, out_dtype=jnp.float32)  # f32 flag path
    out_bf16, out_f32 = jax.block_until_ready((out_bf16, out_f32))
    assert out_bf16.shape == (batch, img_dim) and out_bf16.dtype == jnp.bfloat16
    assert out_f32.shape == (batch, img_dim) and out_f32.dtype == jnp.float32

    # Reference with matching bf16-matmul / f32-accumulate precision.
    h_ref = jnp.dot(x.astype(jnp.bfloat16), w1, preferred_element_type=jnp.float32) + b1
    h_ref = jnp.maximum(h_ref, LEAKY_SLOPE * h_ref)
    ref_f32 = jnp.tanh(jnp.dot(h_ref.astype(jnp.bfloat16), w2,
                               preferred_element_type=jnp.float32) + b2)
    assert jnp.allclose(out_f32, ref_f32, atol=2e-3, rtol=2e-3)
    assert jnp.allclose(out_bf16.astype(jnp.float32),
                        ref_f32.astype(jnp.bfloat16).astype(jnp.float32),
                        atol=2e-2, rtol=2e-2)

    # Looser sanity check against the pure-f32 forward (semantics of the PyTorch module).
    h32 = x @ w1.astype(jnp.float32) + b1
    h32 = jnp.maximum(h32, LEAKY_SLOPE * h32)
    ref32 = jnp.tanh(h32 @ w2.astype(jnp.float32) + b2)
    assert jnp.allclose(out_f32, ref32, atol=5e-2, rtol=5e-2)

    print("KERNEL_OK")
</pallas_src>

<mosaic_0001>
module attributes {stable_mosaic.version = 11 : i64} {
  func.func @_generator_kernel(%arg0: i32, %arg1: memref<32x64xf32, #tpu.memory_space<vmem>>, %arg2: memref<64x128xbf16, #tpu.memory_space<vmem>>, %arg3: memref<1x128xf32, #tpu.memory_space<vmem>>, %arg4: memref<128x256xbf16, #tpu.memory_space<vmem>>, %arg5: memref<1x256xf32, #tpu.memory_space<vmem>>, %arg6: memref<32x256xbf16, #tpu.memory_space<vmem>>) attributes {dimension_semantics = [#tpu.dimension_semantics<parallel>], iteration_bounds = array<i64: 2>, scalar_prefetch = 0 : i64, scratch_operands = 0 : i64, tpu.core_type = #tpu.core_type<tc>, window_params = [{transform_indices = @transform_0, window_bounds = array<i64: 32, 64>}, {pipeline_mode = #tpu.pipeline_mode<synchronous>, transform_indices = @transform_1, window_bounds = array<i64: 64, 128>}, {pipeline_mode = #tpu.pipeline_mode<synchronous>, transform_indices = @transform_2, window_bounds = array<i64: 1, 128>}, {pipeline_mode = #tpu.pipeline_mode<synchronous>, transform_indices = @transform_3, window_bounds = array<i64: 128, 256>}, {pipeline_mode = #tpu.pipeline_mode<synchronous>, transform_indices = @transform_4, window_bounds = array<i64: 1, 256>}, {transform_indices = @transform_5, window_bounds = array<i64: 32, 256>}]} {
    %c0 = arith.constant 0 : index
    %c0_0 = arith.constant 0 : index
    %0 = vector.load %arg1[%c0, %c0_0] : memref<32x64xf32, #tpu.memory_space<vmem>>, vector<32x64xf32>
    %1 = arith.truncf %0 : vector<32x64xf32> to vector<32x64xbf16>
    %c0_1 = arith.constant 0 : index
    %c0_2 = arith.constant 0 : index
    %2 = vector.load %arg2[%c0_1, %c0_2] : memref<64x128xbf16, #tpu.memory_space<vmem>>, vector<64x128xbf16>
    %cst = arith.constant dense<0.000000e+00> : vector<32x128xf32>
    %3 = tpu.matmul %1, %2, %cst {dimension_numbers = #tpu.dot_dimension_numbers<[1], [0], [0], [1], [0, 0, 1, 1], [], []>} : vector<32x64xbf16>, vector<64x128xbf16>, vector<32x128xf32> -> vector<32x128xf32>
    %c0_3 = arith.constant 0 : index
    %c0_4 = arith.constant 0 : index
    %4 = vector.load %arg3[%c0_3, %c0_4] : memref<1x128xf32, #tpu.memory_space<vmem>>, vector<1x128xf32>
    %5 = vector.broadcast %4 : vector<1x128xf32> to vector<32x128xf32>
    %6 = arith.addf %3, %5 : vector<32x128xf32>
    %cst_5 = arith.constant 4.000000e-02 : f32
    %7 = vector.broadcast %cst_5 : f32 to vector<32x128xf32>
    %8 = arith.mulf %7, %6 : vector<32x128xf32>
    %9 = arith.maximumf %6, %8 : vector<32x128xf32>
    %10 = arith.truncf %9 : vector<32x128xf32> to vector<32x128xbf16>
    %c0_6 = arith.constant 0 : index
    %c0_7 = arith.constant 0 : index
    %11 = vector.load %arg4[%c0_6, %c0_7] : memref<128x256xbf16, #tpu.memory_space<vmem>>, vector<128x256xbf16>
    %cst_8 = arith.constant dense<0.000000e+00> : vector<32x256xf32>
    %12 = tpu.matmul %10, %11, %cst_8 {dimension_numbers = #tpu.dot_dimension_numbers<[1], [0], [0], [1], [0, 0, 1, 1], [], []>} : vector<32x128xbf16>, vector<128x256xbf16>, vector<32x256xf32> -> vector<32x256xf32>
    %c0_9 = arith.constant 0 : index
    %c0_10 = arith.constant 0 : index
    %13 = vector.load %arg5[%c0_9, %c0_10] : memref<1x256xf32, #tpu.memory_space<vmem>>, vector<1x256xf32>
    %14 = vector.broadcast %13 : vector<1x256xf32> to vector<32x256xf32>
    %15 = arith.addf %12, %14 : vector<32x256xf32>
    %16 = math.tanh %15 : vector<32x256xf32>
    %17 = arith.truncf %16 : vector<32x256xf32> to vector<32x256xbf16>
    %c0_11 = arith.constant 0 : index
    %c0_12 = arith.constant 0 : index
    %18 = vector.load %arg6[%c0_11, %c0_12] : memref<32x256xbf16, #tpu.memory_space<vmem>>, vector<32x256xbf16>
    tpu.vector_store %arg6[%c0_11, %c0_12], %17 {strides = array<i32>} : memref<32x256xbf16, #tpu.memory_space<vmem>>, vector<32x256xbf16>,
    return
  }
  func.func @transform_0(%arg0: i32) -> (i32, i32) {
    %c0_i32 = arith.constant 0 : i32
    %c0_i32_0 = arith.constant 0 : i32
    return %arg0, %c0_i32 : i32, i32
  }
  func.func @transform_1(%arg0: i32) -> (i32, i32) {
    %c0_i32 = arith.constant 0 : i32
    %c0_i32_0 = arith.constant 0 : i32
    %c0_i32_1 = arith.constant 0 : i32
    return %c0_i32, %c0_i32_0 : i32, i32
  }
  func.func @transform_2(%arg0: i32) -> (i32, i32) {
    %c0_i32 = arith.constant 0 : i32
    %c0_i32_0 = arith.constant 0 : i32
    %c0_i32_1 = arith.constant 0 : i32
    return %c0_i32, %c0_i32_0 : i32, i32
  }
  func.func @transform_3(%arg0: i32) -> (i32, i32) {
    %c0_i32 = arith.constant 0 : i32
    %c0_i32_0 = arith.constant 0 : i32
    %c0_i32_1 = arith.constant 0 : i32
    return %c0_i32, %c0_i32_0 : i32, i32
  }
  func.func @transform_4(%arg0: i32) -> (i32, i32) {
    %c0_i32 = arith.constant 0 : i32
    %c0_i32_0 = arith.constant 0 : i32
    %c0_i32_1 = arith.constant 0 : i32
    return %c0_i32, %c0_i32_0 : i32, i32
  }
  func.func @transform_5(%arg0: i32) -> (i32, i32) {
    %c0_i32 = arith.constant 0 : i32
    %c0_i32_0 = arith.constant 0 : i32
    return %arg0, %c0_i32 : i32, i32
  }
}

</mosaic_0001>

<llo_original>
// kernel: tpu_custom_call.1
$region0: #{tpu_custom_call.1}
  #allocation0 [shape = 'u32[]', space=smem, size = 0x4, offset = 0x4, fixed_abs, tag = 'smem constant byte address 0x4 - core index']
  #allocation1 [shape = 'u32[144,128]{1,0:T(1,128)}', space=vmem, size = 0x12000, scoped, tag = 'internal scratch']
  %s0 = inlined_call_operand.hbm [shape: f32[64,64], index: 0, kind: input, shape index: {}]
  %s1 = inlined_call_operand.hbm [shape: bf16[64,128], index: 1, kind: input, shape index: {}]
  %s2 = inlined_call_operand.vmem [shape: f32[1,128], index: 2, kind: input, shape index: {}]
  %s3 = inlined_call_operand.hbm [shape: bf16[128,256], index: 3, kind: input, shape index: {}]
  %s4 = inlined_call_operand.vmem [shape: f32[1,256], index: 4, kind: input, shape index: {}]
  %s5 = inlined_call_operand.hbm [shape: bf16[64,256], index: 5, kind: output, shape index: {}]
  %s6 = sld [smem:[#allocation0]]
  $region65: #{tpu_custom_call.1} parent=0
    _
  %s8 = ssub.s32 1, %s6
  %s9 = scalar_select 0, %s8, %s6
  $region1: #{tpu_custom_call.1} parent=0
    #allocation2 [shape = 'u8[32768]{0}', space=vmem, size = 0x8000, scoped, tag = 'input window, operand 0']
    #allocation3 [shape = 's32[2]{0}', space=sflag, size = 0x8, scoped, tag = 'scoped memory for tpu_custom_call.1']
    #allocation4 [shape = 's32[2]{0}', space=sflag, size = 0x8, scoped, tag = 'scoped memory for tpu_custom_call.1']
    #allocation5 [shape = 'u8[16384]{0}', space=vmem, size = 0x4000, scoped, tag = 'input window, operand 1, single buffered']
    #allocation6 [shape = 's32[1]{0}', space=sflag, size = 0x4, scoped, tag = 'scoped memory for tpu_custom_call.1']
    #allocation7 [shape = 'u8[65536]{0}', space=vmem, size = 0x10000, scoped, tag = 'input window, operand 3, single buffered']
    #allocation8 [shape = 'u8[32768]{0}', space=vmem, size = 0x8000, scoped, tag = 'output window, operand 0']
    %10 = vsyncpa [#allocation3], 0
    %s11 = scalar_lea.sflag [#allocation3], 1
    %12 = vsyncpa %s11, 0
    %13 = vsyncpa [#allocation6], 0
    %14 = vsyncpa [#allocation4], 0
    %s15 = scalar_lea.sflag [#allocation4], 1
    %16 = vsyncpa %s15, 0
    loop: start=0, step=1, limit=4
    $region2: #{tpu_custom_call.1} parent=1 // loop_pre_header
      _
    $region3: #{tpu_custom_call.1} parent=1 // loop_header
      %s18 = sphi 0, %s22
      %p19 = scmp.ge.s32.totalorder %s18, 4
      %s28 = sphi 0, %s30
      %s31 = sphi 0, %s28
      %s32 = sphi 0, %s31
      %s48 = sphi 0, %s32
      %s52 = sphi 0, %s52
      %s54 = sphi 0, %s52
      %s55 = sphi 0, %s54
      %s69 = sphi 0, %s55
      %s73 = sphi 0, %s73
      %s75 = sphi 0, %s73
      %s76 = sphi 0, %s75
      %s90 = sphi 0, %s76
      %s94 = sphi 0, %s94
      %s96 = sphi 0, %s94
      %s97 = sphi 0, %s96
      %s111 = sphi 0, %s97
      %s115 = sphi 0, %s115
      %s117 = sphi 0, %s115
      %s118 = sphi 0, %s117
      %s132 = sphi 0, %s118
      %s138 = sphi 0, %s140
      %s141 = sphi 0, %s138
      %s142 = sphi 0, %s141
      %s158 = sphi 0, %s142
    $region4: #{tpu_custom_call.1} parent=1 // loop_header_branch
      %21 = sbr.rel (%p19) target = $region8
    $region5: #{tpu_custom_call.1} parent=1 // loop_body
      %s23 = ssub.s32 %s18, 1
      %s24 = ssub.s32 %s18, 2
      %s25 = sadd.s32 %s18, 1
      %s26 = ssub.s32 %s18, %s25
      %p27 = scmp.eq.s32.totalorder %s26, 0
      %s29 = sadd.s32 %s28, 1
      %s30 = scalar_select %p27, %s28, %s29
      %p33 = pneg %p27
      %p34 = scmp.eq.s32.totalorder %s18, 1
      %p35 = por %p33, %p34
      %p36 = scmp.ne.s32.totalorder %s28, %s31
      %p37 = scmp.eq.s32.totalorder %s18, 0
      %p38 = por %p36, %p37
      %p39 = scmp.ne.s32.totalorder %s28, %s31
      %p40 = scmp.eq.s32.totalorder %s23, 1
      %p41 = por %p39, %p40
      %p42 = scmp.ne.s32.totalorder %s31, %s32
      %p43 = scmp.eq.s32.totalorder %s23, 0
      %p44 = por %p42, %p43
      %p45 = scmp.ne.s32.totalorder %s31, %s32
      %p46 = scmp.eq.s32.totalorder %s24, 1
      %p47 = por %p45, %p46
      %p49 = scmp.ne.s32.totalorder %s32, %s48
      %p50 = scmp.eq.s32.totalorder %s24, 0
      %p51 = por %p49, %p50
      %s53 = sadd.s32 %s52, 1
      %p56 = scmp.eq.s32.totalorder %s18, 1
      %p57 = scmp.ne.s32.totalorder %s52, %s54
      %p58 = scmp.eq.s32.totalorder %s18, 0
      %p59 = por %p57, %p58
      %p60 = scmp.ne.s32.totalorder %s52, %s54
      %p61 = scmp.eq.s32.totalorder %s23, 1
      %p62 = por %p60, %p61
      %p63 = scmp.ne.s32.totalorder %s54, %s55
      %p64 = scmp.eq.s32.totalorder %s23, 0
      %p65 = por %p63, %p64
      %p66 = scmp.ne.s32.totalorder %s54, %s55
      %p67 = scmp.eq.s32.totalorder %s24, 1
      %p68 = por %p66, %p67
      %p70 = scmp.ne.s32.totalorder %s55, %s69
      %p71 = scmp.eq.s32.totalorder %s24, 0
      %p72 = por %p70, %p71
      %s74 = sadd.s32 %s73, 1
      %p77 = scmp.eq.s32.totalorder %s18, 1
      %p78 = scmp.ne.s32.totalorder %s73, %s75
      %p79 = scmp.eq.s32.totalorder %s18, 0
      %p80 = por %p78, %p79
      %p81 = scmp.ne.s32.totalorder %s73, %s75
      %p82 = scmp.eq.s32.totalorder %s23, 1
      %p83 = por %p81, %p82
      %p84 = scmp.ne.s32.totalorder %s75, %s76
      %p85 = scmp.eq.s32.totalorder %s23, 0
      %p86 = por %p84, %p85
      %p87 = scmp.ne.s32.totalorder %s75, %s76
      %p88 = scmp.eq.s32.totalorder %s24, 1
      %p89 = por %p87, %p88
      %p91 = scmp.ne.s32.totalorder %s76, %s90
      %p92 = scmp.eq.s32.totalorder %s24, 0
      %p93 = por %p91, %p92
      %s95 = sadd.s32 %s94, 1
      %p98 = scmp.eq.s32.totalorder %s18, 1
      %p99 = scmp.ne.s32.totalorder %s94, %s96
      %p100 = scmp.eq.s32.totalorder %s18, 0
      %p101 = por %p99, %p100
      %p102 = scmp.ne.s32.totalorder %s94, %s96
      %p103 = scmp.eq.s32.totalorder %s23, 1
      %p104 = por %p102, %p103
      %p105 = scmp.ne.s32.totalorder %s96, %s97
      %p106 = scmp.eq.s32.totalorder %s23, 0
      %p107 = por %p105, %p106
      %p108 = scmp.ne.s32.totalorder %s96, %s97
      %p109 = scmp.eq.s32.totalorder %s24, 1
      %p110 = por %p108, %p109
      %p112 = scmp.ne.s32.totalorder %s97, %s111
      %p113 = scmp.eq.s32.totalorder %s24, 0
      %p114 = por %p112, %p113
      %s116 = sadd.s32 %s115, 1
      %p119 = scmp.eq.s32.totalorder %s18, 1
      %p120 = scmp.ne.s32.totalorder %s115, %s117
      %p121 = scmp.eq.s32.totalorder %s18, 0
      %p122 = por %p120, %p121
      %p123 = scmp.ne.s32.totalorder %s115, %s117
      %p124 = scmp.eq.s32.totalorder %s23, 1
      %p125 = por %p123, %p124
      %p126 = scmp.ne.s32.totalorder %s117, %s118
      %p127 = scmp.eq.s32.totalorder %s23, 0
      %p128 = por %p126, %p127
      %p129 = scmp.ne.s32.totalorder %s117, %s118
      %p130 = scmp.eq.s32.totalorder %s24, 1
      %p131 = por %p129, %p130
      %p133 = scmp.ne.s32.totalorder %s118, %s132
      %p134 = scmp.eq.s32.totalorder %s24, 0
      %p135 = por %p133, %p134
      %s136 = ssub.s32 %s18, %s25
      %p137 = scmp.eq.s32.totalorder %s136, 0
      %s139 = sadd.s32 %s138, 1
      %s140 = scalar_select %p137, %s138, %s139
      %p143 = pneg %p137
      %p144 = scmp.eq.s32.totalorder %s18, 1
      %p145 = por %p143, %p144
      %p146 = scmp.ne.s32.totalorder %s138, %s141
      %p147 = scmp.eq.s32.totalorder %s18, 0
      %p148 = por %p146, %p147
      %p149 = scmp.ne.s32.totalorder %s138, %s141
      %p150 = scmp.eq.s32.totalorder %s23, 1
      %p151 = por %p149, %p150
      %p152 = scmp.ne.s32.totalorder %s141, %s142
      %p153 = scmp.eq.s32.totalorder %s23, 0
      %p154 = por %p152, %p153
      %p155 = scmp.ne.s32.totalorder %s141, %s142
      %p156 = scmp.eq.s32.totalorder %s24, 1
      %p157 = por %p155, %p156
      %p159 = scmp.ne.s32.totalorder %s142, %s158
      %p160 = scmp.eq.s32.totalorder %s24, 0
      %p161 = por %p159, %p160
      %p162 = scmp.le.s32.totalorder 1, %s18
      %p163 = scmp.lt.s32.totalorder %s18, 3
      %p164 = pnand %p162, %p163
      %p165 = pneg %p164
      // Predicated region
      $region9: #{tpu_custom_call.1} parent=5 // pred_check
        _
      $region10: #{tpu_custom_call.1} parent=5 // pred_check_branch
        %167 = sbr.rel (%p164) target = $region12
      $region11: #{tpu_custom_call.1} parent=5 // pred_region
        %s168 = ssub.s32 %s18, 1
        // Predicated region
        $region13: #{tpu_custom_call.1} parent=11 // pred_check
          %p169 = pneg %p65
        $region14: #{tpu_custom_call.1} parent=11 // pred_check_branch
          %171 = sbr.rel (%p169) target = $region16
        $region15: #{tpu_custom_call.1} parent=11 // pred_region
          %s173 = ssub.s32 512, 512
          %174 = vsyncadd [#allocation6], %s173
          %s175 = sshll.u32 [#allocation5], 4
          %s176 = int_to_ptr.vmem [resolvable:$true] %s175
          %181 = dma.hbm_to_vmem [thread:$0]  %s1, 512, %s176, [#allocation6], 64, 64, 4
        $region16: #{tpu_custom_call.1} parent=11 // pred_fallthru
          _
        // Predicated region
        $region17: #{tpu_custom_call.1} parent=11 // pred_check
          %p182 = pneg %p86
        $region18: #{tpu_custom_call.1} parent=11 // pred_check_branch
          %184 = sbr.rel (%p182) target = $region20
        $region19: #{tpu_custom_call.1} parent=11 // pred_region
          _
        $region20: #{tpu_custom_call.1} parent=11 // pred_fallthru
          _
        // Predicated region
        $region21: #{tpu_custom_call.1} parent=11 // pred_check
          %p185 = pneg %p107
        $region22: #{tpu_custom_call.1} parent=11 // pred_check_branch
          %187 = sbr.rel (%p185) target = $region24
        $region23: #{tpu_custom_call.1} parent=11 // pred_region
          %s189 = ssub.s32 2048, 2048
          %190 = vsyncadd [#allocation6], %s189
          %s191 = sshll.u32 [#allocation7], 4
          %s192 = int_to_ptr.vmem [resolvable:$true] %s191
          %197 = dma.hbm_to_vmem [thread:$0]  %s3, 2048, %s192, [#allocation6], 128, 128, 8
        $region24: #{tpu_custom_call.1} parent=11 // pred_fallthru
          _
        // Predicated region
        $region25: #{tpu_custom_call.1} parent=11 // pred_check
          %p198 = pneg %p128
        $region26: #{tpu_custom_call.1} parent=11 // pred_check_branch
          %200 = sbr.rel (%p198) target = $region28
        $region27: #{tpu_custom_call.1} parent=11 // pred_region
          _
        $region28: #{tpu_custom_call.1} parent=11 // pred_fallthru
          _
      $region12: #{tpu_custom_call.1} parent=5 // pred_fallthru
        _
      %p201 = scmp.lt.s32.totalorder %s18, 2
      // Predicated region
      $region29: #{tpu_custom_call.1} parent=5 // pred_check
        %p202 = pneg %p201
      $region30: #{tpu_custom_call.1} parent=5 // pred_check_branch
        %204 = sbr.rel (%p202) target = $region32
      $region31: #{tpu_custom_call.1} parent=5 // pred_region
        // Predicated region
        $region33: #{tpu_custom_call.1} parent=31 // pred_check
          %p205 = pneg %p38
        $region34: #{tpu_custom_call.1} parent=31 // pred_check_branch
          %207 = sbr.rel (%p205) target = $region36
        $region35: #{tpu_custom_call.1} parent=31 // pred_region
          %s208 = sand.u32 %s28, 1
          %s209 = scalar_lea.sflag [#allocation3], %s208
          %s210 = sand.u32 %s28, 1
          %s211 = smul.addr %s210, 32
          %s212 = scalar_lea.vmem [#allocation2], %s211
          %s213 = smul.u32 4, %s18
          %s215 = ssub.s32 512, 512
          %216 = vsyncadd %s209, %s215
          %s217 = smul.addr %s213, 128
          %s218 = scalar_lea.hbm %s0, %s217
          %s219 = sshll.u32 %s212, 4
          %s220 = int_to_ptr.vmem [resolvable:$true] %s219
          %225 = dma.hbm_to_vmem [thread:$0]  %s218, 512, %s220, %s209, 128, 128, 8
        $region36: #{tpu_custom_call.1} parent=31 // pred_fallthru
          _
      $region32: #{tpu_custom_call.1} parent=5 // pred_fallthru
        _
      %p226 = scmp.le.s32.totalorder 1, %s18
      %p227 = scmp.lt.s32.totalorder %s18, 3
      %p228 = pnand %p226, %p227
      %p229 = pneg %p228
      // Predicated region
      $region37: #{tpu_custom_call.1} parent=5 // pred_check
        _
      $region38: #{tpu_custom_call.1} parent=5 // pred_check_branch
        %231 = sbr.rel (%p228) target = $region40
      $region39: #{tpu_custom_call.1} parent=5 // pred_region
        %s232 = ssub.s32 %s18, 1
        %s233 = sand.u32 %s31, 1
        %s234 = scalar_lea.sflag [#allocation3], %s233
        %s235 = sand.u32 %s31, 1
        %s236 = smul.addr %s235, 32
        %s237 = scalar_lea.vmem [#allocation2], %s236
        // Predicated region
        $region41: #{tpu_custom_call.1} parent=39 // pred_check
          %p238 = pneg %p44
        $region42: #{tpu_custom_call.1} parent=39 // pred_check_branch
          %240 = sbr.rel (%p238) target = $region44
        $region43: #{tpu_custom_call.1} parent=39 // pred_region
          %241 = dma.done %s234, 512
        $region44: #{tpu_custom_call.1} parent=39 // pred_fallthru
          _
        // Predicated region
        $region45: #{tpu_custom_call.1} parent=39 // pred_check
          %p242 = pneg %p65
        $region46: #{tpu_custom_call.1} parent=39 // pred_check_branch
          %244 = sbr.rel (%p242) target = $region48
        $region47: #{tpu_custom_call.1} parent=39 // pred_region
          %245 = dma.done [#allocation6], 512
        $region48: #{tpu_custom_call.1} parent=39 // pred_fallthru
          _
        // Predicated region
        $region49: #{tpu_custom_call.1} parent=39 // pred_check
          %p246 = pneg %p107
        $region50: #{tpu_custom_call.1} parent=39 // pred_check_branch
          %248 = sbr.rel (%p246) target = $region52
        $region51: #{tpu_custom_call.1} parent=39 // pred_region
          %249 = dma.done [#allocation6], 2048
        $region52: #{tpu_custom_call.1} parent=39 // pred_fallthru
          _
        %s250 = sand.u32 %s31, 1
        %s251 = scalar_lea.sflag [#allocation3], %s250
        %s252 = sand.u32 %s31, 1
        %s253 = smul.addr %s252, 32
        %s254 = scalar_lea.vmem [#allocation2], %s253
        %p255 = pneg %p44
        %p256 = pneg %p41
        %p257 = pneg %p65
        %p258 = pneg %p62
        %p259 = pneg %p86
        %p260 = pneg %p83
        %p261 = pneg %p107
        %p262 = pneg %p104
        %p263 = pneg %p128
        %p264 = pneg %p125
        %p265 = pneg %p154
        %p266 = pneg %p151
        %s267 = sand.u32 %s141, 1
        %s268 = scalar_lea.sflag [#allocation4], %s267
        %s269 = sand.u32 %s141, 1
        %s270 = smul.addr %s269, 32
        %s271 = scalar_lea.vmem [#allocation8], %s270
        %s272 = smul.u32 4, %s23
        %s273 = smul.u32 4, %s23
        %v275 = vld [vmem:[%s237] sm:$0xff]
        %v276 = vld [vmem:[%s237 + $0x8] sm:$0xff]
        %v277 = vld [vmem:[%s237 + $0x10] sm:$0xff]
        %v278 = vld [vmem:[%s237 + $0x18] sm:$0xff]
        %v279 = vpack.c.bf16 %v276, %v275
        %v280 = vpack.c.bf16 %v278, %v277
        %v281 = vld [vmem:[#allocation5] sm:$0xf]
        %v282 = vld [vmem:[#allocation5 + $0x4] sm:$0xf]
        %v283 = vld [vmem:[#allocation5 + $0x8] sm:$0xf]
        %v284 = vld [vmem:[#allocation5 + $0xc] sm:$0xf]
        %v285 = vld [vmem:[#allocation5 + $0x10] sm:$0xf]
        %v286 = vld [vmem:[#allocation5 + $0x14] sm:$0xf]
        %v287 = vld [vmem:[#allocation5 + $0x18] sm:$0xf]
        %v288 = vld [vmem:[#allocation5 + $0x1c] sm:$0xf]
        %v289 = vld [vmem:[%s2] sm:$0x1]
        %v291 = vlaneseq
        %v292 = vshrl.u32 %v291, 7
        %v293 = vsub.s32 0, %v292
        %v294 = vrot.slane %v289, %v293
        %v304 = vunpack.c.l.b16 %v281
        %v305 = vunpack.c.l.b16 %v282
        %v306 = vunpack.c.l.b16 %v283
        %v307 = vunpack.c.l.b16 %v284
        %v308 = vunpack.c.l.b16 %v285
        %v309 = vunpack.c.l.b16 %v286
        %v310 = vunpack.c.l.b16 %v287
        %v311 = vunpack.c.l.b16 %v288
        %v312 = vpack.c.b16 %v305, %v304
        %v313 = vpack.c.b16 %v307, %v306
        %v314 = vpack.c.b16 %v309, %v308
        %v315 = vpack.c.b16 %v311, %v310
        %vm320 = vcmask 523264
        %v322 = vsel %vm320, %v279, 0
        %v325 = vsel %vm320, %v280, 0
        %327 = vmatprep.subr.bf16.mxu0 0
        %328 = vmatpush1.bf16.msra.mxu0 %v312
        %329 = vmatprep.subr.bf16.mxu0 0
        %330 = vmatpush1.bf16.msra.mxu0 %v313
        %331 = vmatprep.subr.bf16.mxu0 0
        %332 = vmatpush1.bf16.msra.mxu0 %v314
        %333 = vmatprep.subr.bf16.mxu0 0
        %334 = vmatpush1.bf16.msra.mxu0 %v315
        %335 = vmatprep.subr.bf16.mxu0 0
        %336 = vmatpush1.bf16.msra.mxu0 0
        %337 = vmatprep.subr.bf16.mxu0 0
        %338 = vmatpush1.bf16.msra.mxu0 0
        %339 = vmatprep.subr.bf16.mxu0 0
        %340 = vmatpush1.bf16.msra.mxu0 0
        %341 = vmatprep.subr.bf16.mxu0 0
        %342 = vmatpush1.bf16.msra.mxu0 0
        %343 = vmatprep.subr.bf16.mxu0 0
        %344 = vmatpush1.bf16.msra.mxu0 0
        %345 = vmatprep.subr.bf16.mxu0 0
        %346 = vmatpush1.bf16.msra.mxu0 0
        %347 = vmatprep.subr.bf16.mxu0 0
        %348 = vmatpush1.bf16.msra.mxu0 0
        %349 = vmatprep.subr.bf16.mxu0 0
        %350 = vmatpush1.bf16.msra.mxu0 0
        %351 = vmatprep.subr.bf16.mxu0 0
        %352 = vmatpush1.bf16.msra.mxu0 0
        %353 = vmatprep.subr.bf16.mxu0 0
        %354 = vmatpush1.bf16.msra.mxu0 0
        %355 = vmatprep.subr.bf16.mxu0 0
        %356 = vmatpush1.bf16.msra.mxu0 0
        %357 = vmatprep.subr.bf16.mxu0 0
        %358 = vmatpush1.bf16.msra.mxu0 0
        %359 = vmatprep.mubr.bf16.mxu0 0
        %360 = vmatmul.mubr.bf16.gmra.mrb[0].mxu0 %v322
        %v361 = vpop.f32.mrb[0].mxu0
        %v362 = vadd.f32 %v294, %v361
        %v363 = vpop.f32.mrb[0].mxu0
        %v364 = vpop.f32.mrb[0].mxu0
        %v365 = vadd.f32 %v294, %v364
        %v366 = vpop.f32.mrb[0].mxu0
        %367 = vmatprep.mubr.bf16.mxu0 0
        %368 = vmatmul.mubr.bf16.gmra.mrb[0].mxu0 %v325
        %v369 = vpop.f32.mrb[0].mxu0
        %v370 = vadd.f32 %v294, %v369
        %v371 = vpop.f32.mrb[0].mxu0
        %v372 = vpop.f32.mrb[0].mxu0
        %v373 = vadd.f32 %v294, %v372
        %v374 = vpop.f32.mrb[0].mxu0
        %375 = vdwg.mxu0
        %v376 = vmul.f32 %v362, 0.04
        %v377 = vmul.f32 %v365, 0.04
        %v378 = vmul.f32 %v370, 0.04
        %v379 = vmul.f32 %v373, 0.04
        %v380 = vmax.f32 %v362, %v376
        %v381 = vmax.f32 %v365, %v377
        %v382 = vmax.f32 %v370, %v378
        %v383 = vmax.f32 %v373, %v379
        %v384 = vpack.c.bf16 %v381, %v380
        %v385 = vpack.c.bf16 %v383, %v382
        %v386 = vld [vmem:[#allocation7] sm:$0xff]
        %v387 = vld [vmem:[#allocation7 + $0x8] sm:$0xff]
        %v388 = vld [vmem:[#allocation7 + $0x10] sm:$0xff]
        %v389 = vld [vmem:[#allocation7 + $0x18] sm:$0xff]
        %v390 = vld [vmem:[#allocation7 + $0x20] sm:$0xff]
        %v391 = vld [vmem:[#allocation7 + $0x28] sm:$0xff]
        %v392 = vld [vmem:[#allocation7 + $0x30] sm:$0xff]
        %v393 = vld [vmem:[#allocation7 + $0x38] sm:$0xff]
        %v394 = vld [vmem:[#allocation7 + $0x40] sm:$0xff]
        %v395 = vld [vmem:[#allocation7 + $0x48] sm:$0xff]
        %v396 = vld [vmem:[#allocation7 + $0x50] sm:$0xff]
        %v397 = vld [vmem:[#allocation7 + $0x58] sm:$0xff]
        %v398 = vld [vmem:[#allocation7 + $0x60] sm:$0xff]
        %v399 = vld [vmem:[#allocation7 + $0x68] sm:$0xff]
        %v400 = vld [vmem:[#allocation7 + $0x70] sm:$0xff]
        %v401 = vld [vmem:[#allocation7 + $0x78] sm:$0xff]
        %v402 = vld [vmem:[%s4] sm:$0x3]
        %v404 = vlaneseq
        %v405 = vshrl.u32 %v404, 7
        %v406 = vsub.s32 0, %v405
        %v407 = vrot.slane %v402, %v406
        %v408 = vlaneseq
        %v409 = vshrl.u32 %v408, 7
        %v410 = vsub.s32 1, %v409
        %v411 = vrot.slane %v402, %v410
        %v430 = vunpack.c.l.b16 %v386
        %v431 = vunpack.c.h.b16 %v386
        %v432 = vunpack.c.l.b16 %v387
        %v433 = vunpack.c.h.b16 %v387
        %v434 = vunpack.c.l.b16 %v388
        %v435 = vunpack.c.h.b16 %v388
        %v436 = vunpack.c.l.b16 %v389
        %v437 = vunpack.c.h.b16 %v389
        %v438 = vunpack.c.l.b16 %v390
        %v439 = vunpack.c.h.b16 %v390
        %v440 = vunpack.c.l.b16 %v391
        %v441 = vunpack.c.h.b16 %v391
        %v442 = vunpack.c.l.b16 %v392
        %v443 = vunpack.c.h.b16 %v392
        %v444 = vunpack.c.l.b16 %v393
        %v445 = vunpack.c.h.b16 %v393
        %v446 = vunpack.c.l.b16 %v394
        %v447 = vunpack.c.h.b16 %v394
        %v448 = vunpack.c.l.b16 %v395
        %v449 = vunpack.c.h.b16 %v395
        %v450 = vunpack.c.l.b16 %v396
        %v451 = vunpack.c.h.b16 %v396
        %v452 = vunpack.c.l.b16 %v397
        %v453 = vunpack.c.h.b16 %v397
        %v454 = vunpack.c.l.b16 %v398
        %v455 = vunpack.c.h.b16 %v398
        %v456 = vunpack.c.l.b16 %v399
        %v457 = vunpack.c.h.b16 %v399
        %v458 = vunpack.c.l.b16 %v400
        %v459 = vunpack.c.h.b16 %v400
        %v460 = vunpack.c.l.b16 %v401
        %v461 = vunpack.c.h.b16 %v401
        %v462 = vpack.c.b16 %v432, %v430
        %v463 = vpack.c.b16 %v433, %v431
        %v464 = vpack.c.b16 %v436, %v434
        %v465 = vpack.c.b16 %v437, %v435
        %v466 = vpack.c.b16 %v440, %v438
        %v467 = vpack.c.b16 %v441, %v439
        %v468 = vpack.c.b16 %v444, %v442
        %v469 = vpack.c.b16 %v445, %v443
        %v470 = vpack.c.b16 %v448, %v446
        %v471 = vpack.c.b16 %v449, %v447
        %v472 = vpack.c.b16 %v452, %v450
        %v473 = vpack.c.b16 %v453, %v451
        %v474 = vpack.c.b16 %v456, %v454
        %v475 = vpack.c.b16 %v457, %v455
        %v476 = vpack.c.b16 %v460, %v458
        %v477 = vpack.c.b16 %v461, %v459
        %494 = vmatprep.subr.bf16.mxu0 %v463
        %495 = vmatpush1.bf16.msra.mxu0 %v462
        %496 = vmatprep.subr.bf16.mxu0 %v465
        %497 = vmatpush1.bf16.msra.mxu0 %v464
        %498 = vmatprep.subr.bf16.mxu0 %v467
        %499 = vmatpush1.bf16.msra.mxu0 %v466
        %500 = vmatprep.subr.bf16.mxu0 %v469
        %501 = vmatpush1.bf16.msra.mxu0 %v468
        %502 = vmatprep.subr.bf16.mxu0 %v471
        %503 = vmatpush1.bf16.msra.mxu0 %v470
        %504 = vmatprep.subr.bf16.mxu0 %v473
        %505 = vmatpush1.bf16.msra.mxu0 %v472
        %506 = vmatprep.subr.bf16.mxu0 %v475
        %507 = vmatpush1.bf16.msra.mxu0 %v474
        %508 = vmatprep.subr.bf16.mxu0 %v477
        %509 = vmatpush1.bf16.msra.mxu0 %v476
        %510 = vmatprep.subr.bf16.mxu0 0
        %511 = vmatpush1.bf16.msra.mxu0 0
        %512 = vmatprep.subr.bf16.mxu0 0
        %513 = vmatpush1.bf16.msra.mxu0 0
        %514 = vmatprep.subr.bf16.mxu0 0
        %515 = vmatpush1.bf16.msra.mxu0 0
        %516 = vmatprep.subr.bf16.mxu0 0
        %517 = vmatpush1.bf16.msra.mxu0 0
        %518 = vmatprep.subr.bf16.mxu0 0
        %519 = vmatpush1.bf16.msra.mxu0 0
        %520 = vmatprep.subr.bf16.mxu0 0
        %521 = vmatpush1.bf16.msra.mxu0 0
        %522 = vmatprep.subr.bf16.mxu0 0
        %523 = vmatpush1.bf16.msra.mxu0 0
        %524 = vmatprep.subr.bf16.mxu0 0
        %525 = vmatpush1.bf16.msra.mxu0 0
        %526 = vmatprep.mubr.bf16.mxu0 0
        %527 = vmatmul.mubr.bf16.gmra.mrb[0].mxu0 %v384
        %v528 = vpop.f32.mrb[0].mxu0
        %v529 = vadd.f32 %v407, %v528
        %v530 = vpop.f32.mrb[0].mxu0
        %v531 = vadd.f32 %v411, %v530
        %v532 = vpop.f32.mrb[0].mxu0
        %v533 = vadd.f32 %v407, %v532
        %v534 = vpop.f32.mrb[0].mxu0
        %v535 = vadd.f32 %v411, %v534
        %536 = vmatprep.mubr.bf16.mxu0 0
        %537 = vmatmul.mubr.bf16.gmra.mrb[0].mxu0 %v385
        %v538 = vpop.f32.mrb[0].mxu0
        %v539 = vadd.f32 %v407, %v538
        %v540 = vpop.f32.mrb[0].mxu0
        %v541 = vadd.f32 %v411, %v540
        %v542 = vpop.f32.mrb[0].mxu0
        %v543 = vadd.f32 %v407, %v542
        %v544 = vpop.f32.mrb[0].mxu0
        %v545 = vadd.f32 %v411, %v544
        %546 = vdwg.mxu0
        %v547 = vtanh.pop %v529
        %v548 = vtanh.pop %v531
        %v549 = vtanh.pop %v533
        %v550 = vtanh.pop %v535
        %v551 = vtanh.pop %v539
        %v552 = vtanh.pop %v541
        %v553 = vtanh.pop %v543
        %v554 = vtanh.pop %v545
        %v555 = vpack.c.bf16 %v549, %v547
        %v556 = vpack.c.bf16 %v550, %v548
        %v557 = vpack.c.bf16 %v553, %v551
        %v558 = vpack.c.bf16 %v554, %v552
        %v563 = vunpack.c.l.b16 %v555
        %v564 = vunpack.c.l.b16 %v556
        %v565 = vunpack.c.h.b16 %v555
        %v566 = vunpack.c.h.b16 %v556
        %v567 = vunpack.c.l.b16 %v557
        %v568 = vunpack.c.l.b16 %v558
        %v569 = vunpack.c.h.b16 %v557
        %v570 = vunpack.c.h.b16 %v558
        %v571 = vpack.c.b16 %v564, %v563
        %v572 = vpack.c.b16 %v566, %v565
        %v573 = vpack.c.b16 %v568, %v567
        %v574 = vpack.c.b16 %v570, %v569
        %579 = vst [vmem:[%s271] sm:$0xff] %v571
        %580 = vst [vmem:[%s271 + $0x8] sm:$0xff] %v572
        %581 = vst [vmem:[%s271 + $0x10] sm:$0xff] %v573
        %582 = vst [vmem:[%s271 + $0x18] sm:$0xff] %v574
        %s583 = sand.u32 %s141, 1
        %s584 = scalar_lea.sflag [#allocation4], %s583
        %s585 = sand.u32 %s141, 1
        %s586 = smul.addr %s585, 32
        %s587 = scalar_lea.vmem [#allocation8], %s586
        // Predicated region
        $region53: #{tpu_custom_call.1} parent=39 // pred_check
          %p588 = pneg %p151
        $region54: #{tpu_custom_call.1} parent=39 // pred_check_branch
          %590 = sbr.rel (%p588) target = $region56
        $region55: #{tpu_custom_call.1} parent=39 // pred_region
          %s591 = smul.u32 4, %s23
          %s593 = ssub.s32 512, 512
          %594 = vsyncadd %s584, %s593
          %s595 = smul.addr %s591, 2
          %s596 = smul.addr %s595, 64
          %s597 = scalar_lea.hbm %s5, %s596
          %s598 = sshll.u32 %s587, 4
          %s599 = int_to_ptr.vmem [resolvable:$true] %s598
          %604 = dma.vmem_to_hbm [thread:$0]  %s599, 512, %s597, %s584, 128, 128, 8
        $region56: #{tpu_custom_call.1} parent=39 // pred_fallthru
          _
      $region40: #{tpu_custom_call.1} parent=5 // pred_fallthru
        _
      %p605 = scmp.le.s32.totalorder 2, %s18
      // Predicated region
      $region57: #{tpu_custom_call.1} parent=5 // pred_check
        %p606 = pneg %p605
      $region58: #{tpu_custom_call.1} parent=5 // pred_check_branch
        %608 = sbr.rel (%p606) target = $region60
      $region59: #{tpu_custom_call.1} parent=5 // pred_region
        %s609 = ssub.s32 %s18, 2
        // Predicated region
        $region61: #{tpu_custom_call.1} parent=59 // pred_check
          %p610 = pneg %p157
        $region62: #{tpu_custom_call.1} parent=59 // pred_check_branch
          %612 = sbr.rel (%p610) target = $region64
        $region63: #{tpu_custom_call.1} parent=59 // pred_region
          %s613 = sand.u32 %s142, 1
          %s614 = scalar_lea.sflag [#allocation4], %s613
          %s615 = sand.u32 %s142, 1
          %s616 = smul.addr %s615, 32
          %s617 = scalar_lea.vmem [#allocation8], %s616
          %618 = dma.done %s614, 512
        $region64: #{tpu_custom_call.1} parent=59 // pred_fallthru
          _
      $region60: #{tpu_custom_call.1} parent=5 // pred_fallthru
        _
    $region6: #{tpu_custom_call.1} parent=1 // loop_footer
      %s22 = sadd.s32 1, %s18
    $region7: #{tpu_custom_call.1} parent=1 // loop_footer_branch
      %17 = sbr.rel target = $region3
    $region8: #{tpu_custom_call.1} parent=1 // loop_exit
      _
    %619 = vsyncpa [#allocation3], 1
    %s620 = scalar_lea.sflag [#allocation3], 1
    %621 = vsyncpa %s620, 1
    %622 = vsyncpa [#allocation6], 1
    %623 = vsyncpa [#allocation4], 1
    %s624 = scalar_lea.sflag [#allocation4], 1
    %625 = vsyncpa %s624, 1

</llo_original>
